<compile_context>
chip_gen: v7x
topology: tpu7x:2x2x1
jax: 0.10.0
libtpu: 0.0.40
codegen_flags: <defaults>
</compile_context>

<pallas_src>
import jax
import jax.numpy as jnp
from jax import lax
from jax.experimental import pallas as pl
from jax.experimental.pallas import tpu as pltpu


def mlp_kernel(alpha_ref, x_ref, w1_ref, b1_ref, w2_ref, b2_ref,
               w3_ref, b3_ref, o_ref):
    # x_ref: (TB, 50) -- native row-major batch tile (batch on sublanes here;
    # after the first contraction everything is (features, TB), batch on lanes).
    x = x_ref[...].astype(jnp.bfloat16)

    # fc1 + ReLU: contract in_features (axis 1 of w1 with axis 1 of x) -> (fc1, TB)
    a1 = lax.dot_general(
        w1_ref[...].astype(jnp.bfloat16), x,
        dimension_numbers=(((1,), (1,)), ((), ())),
        preferred_element_type=jnp.float32) + b1_ref[...]
    h1 = jnp.maximum(a1, 0.0)

    # Dropout -> identity in eval mode.
    # TODO(synk): training-mode dropout (PRNG mask + 1/(1-p) scale) not applied.
    dout = h1

    # fc2 + PReLU(num_parameters=1): (fc2, fc1) @ (fc1, TB) -> (fc2, TB)
    a2 = jnp.dot(w2_ref[...].astype(jnp.bfloat16), dout.astype(jnp.bfloat16),
                 preferred_element_type=jnp.float32) + b2_ref[...]
    alpha = alpha_ref[0]                       # scalar read from SMEM
    h2 = jnp.where(a2 >= 0.0, a2, alpha * a2)

    # out (fc2 -> 1) as VPU multiply + cross-sublane reduce (XLU slot; avoids a
    # tiny fc2x1 MXU matmul), then Sigmoid. Result (1, TB) is lane-dense.
    a3 = jnp.sum(w3_ref[...] * h2, axis=0, keepdims=True) + b3_ref[...]
    o_ref[...] = jax.nn.sigmoid(a3)


def net_forward(x, w1, b1, w2, b2, alpha, w3, b3, *, tb=8192):
    """x: (B, 50) f32 (or bf16). Weights in PyTorch (out, in) layout; biases
    (out, 1); alpha (1,); w3 stored as (fc2, 1); b3 (1, 1). Returns (B, 1)."""
    B, in_features = x.shape
    fc1 = w1.shape[0]
    fc2 = w2.shape[0]

    # ---- batch-tile selection (no padding, no wrapper copies of x) ----
    if B < 256:
        # Single block equal to the full batch: no partial blocks at all.
        tb_eff = B
    else:
        tb_eff = max(128, (tb // 128) * 128)
        # Guarantee >= 2 blocks so the "parallel" axis can use both v7x cores.
        half = pl.cdiv(pl.cdiv(B, 2), 128) * 128
        tb_eff = min(tb_eff, half)
    n_blocks = pl.cdiv(B, tb_eff)
    # NOTE: if tb is raised well past 8192, set
    # pltpu.CompilerParams(vmem_limit_bytes=...) (v5e scoped default is 16 MiB;
    # v7x has only 64 MiB physical VMEM) -- at the default 8192 the footprint
    # is a few MiB and fits everywhere.

    const2d = lambda a: pl.BlockSpec(a.shape, lambda i: (0, 0))

    weight_bytes = 4 * (w1.size + b1.size + w2.size + b2.size +
                        w3.size + b3.size + alpha.size)
    cost = pl.CostEstimate(
        flops=2 * B * (in_features * fc1 + fc1 * fc2 + fc2),
        transcendentals=B,
        bytes_accessed=x.size * x.dtype.itemsize + 4 * B + weight_bytes,
    )

    out = pl.pallas_call(
        mlp_kernel,
        out_shape=jax.ShapeDtypeStruct((1, B), jnp.float32),
        grid=(n_blocks,),
        in_specs=[
            pl.BlockSpec(memory_space=pltpu.MemorySpace.SMEM),       # alpha
            pl.BlockSpec((tb_eff, in_features), lambda i: (i, 0)),   # x (stream)
            const2d(w1), const2d(b1),                                # resident
            const2d(w2), const2d(b2),
            const2d(w3), const2d(b3),
        ],
        out_specs=pl.BlockSpec((1, tb_eff), lambda i: (0, i)),
        compiler_params=pltpu.CompilerParams(
            dimension_semantics=("parallel",)),
        cost_estimate=cost,
    )(alpha, x, w1, b1, w2, b2, w3, b3)

    return out.reshape(B, 1)


def reference_forward(x, w1, b1, w2, b2, alpha, w3, b3):
    a1 = x @ w1.T + b1[:, 0]
    h1 = jnp.maximum(a1, 0.0)
    a2 = h1 @ w2.T + b2[:, 0]
    h2 = jnp.where(a2 >= 0.0, a2, alpha[0] * a2)
    a3 = h2 @ w3 + b3[0, 0]
    return jax.nn.sigmoid(a3)


if __name__ == "__main__":
    in_features, fc1_size, fc2_size = 50, 32, 16

    key = jax.random.PRNGKey(0)
    kx, k1, kb1, k2, kb2, k3, kb3 = jax.random.split(key, 7)

    # Parameters in PyTorch (out, in) layout; biases as (out, 1) columns so
    # they broadcast over the lane (batch) axis inside the kernel.
    w1 = jax.random.normal(k1, (fc1_size, in_features), dtype=jnp.float32) * 0.1
    b1 = jax.random.normal(kb1, (fc1_size, 1), dtype=jnp.float32) * 0.1
    w2 = jax.random.normal(k2, (fc2_size, fc1_size), dtype=jnp.float32) * 0.1
    b2 = jax.random.normal(kb2, (fc2_size, 1), dtype=jnp.float32) * 0.1
    alpha = jnp.full((1,), 0.25, dtype=jnp.float32)          # PReLU default init
    w3 = jax.random.normal(k3, (fc2_size, 1), dtype=jnp.float32) * 0.1
    b3 = jax.random.normal(kb3, (1, 1), dtype=jnp.float32) * 0.1

    # Small single-block case (B < 256) plus a multi-block / partial-tail case.
    for B in (8, 300):
        x = jax.random.normal(jax.random.fold_in(kx, B),
                              (B, in_features), dtype=jnp.float32)
        y = jax.block_until_ready(net_forward(x, w1, b1, w2, b2, alpha, w3, b3))
        y_ref = reference_forward(x, w1, b1, w2, b2, alpha, w3, b3)
        assert y.shape == (B, 1)
        # bf16 MXU operands -> compare against the f32 reference with a
        # correspondingly loosened tolerance.
        assert jnp.allclose(y, y_ref, atol=1e-2, rtol=1e-2), \
            f"mismatch vs reference at B={B}"

    print("KERNEL_OK")
</pallas_src>

<mosaic_0001>
module attributes {stable_mosaic.version = 11 : i64} {
  func.func @mlp_kernel(%arg0: i32, %arg1: memref<1xf32, #tpu.memory_space<smem>>, %arg2: memref<8x50xf32, #tpu.memory_space<vmem>>, %arg3: memref<32x50xf32, #tpu.memory_space<vmem>>, %arg4: memref<32x1xf32, #tpu.memory_space<vmem>>, %arg5: memref<16x32xf32, #tpu.memory_space<vmem>>, %arg6: memref<16x1xf32, #tpu.memory_space<vmem>>, %arg7: memref<16x1xf32, #tpu.memory_space<vmem>>, %arg8: memref<1x1xf32, #tpu.memory_space<vmem>>, %arg9: memref<1x8xf32, #tpu.memory_space<vmem>>) attributes {dimension_semantics = [#tpu.dimension_semantics<parallel>], iteration_bounds = array<i64: 1>, scalar_prefetch = 0 : i64, scratch_operands = 0 : i64, tpu.core_type = #tpu.core_type<tc>, window_params = [{transform_indices = @transform_0, window_bounds = array<i64: 1>}, {transform_indices = @transform_1, window_bounds = array<i64: 8, 50>}, {pipeline_mode = #tpu.pipeline_mode<synchronous>, transform_indices = @transform_2, window_bounds = array<i64: 32, 50>}, {pipeline_mode = #tpu.pipeline_mode<synchronous>, transform_indices = @transform_3, window_bounds = array<i64: 32, 1>}, {pipeline_mode = #tpu.pipeline_mode<synchronous>, transform_indices = @transform_4, window_bounds = array<i64: 16, 32>}, {pipeline_mode = #tpu.pipeline_mode<synchronous>, transform_indices = @transform_5, window_bounds = array<i64: 16, 1>}, {pipeline_mode = #tpu.pipeline_mode<synchronous>, transform_indices = @transform_6, window_bounds = array<i64: 16, 1>}, {pipeline_mode = #tpu.pipeline_mode<synchronous>, transform_indices = @transform_7, window_bounds = array<i64: 1, 1>}, {transform_indices = @transform_8, window_bounds = array<i64: 1, 8>}]} {
    %c0 = arith.constant 0 : index
    %c0_0 = arith.constant 0 : index
    %0 = vector.load %arg2[%c0, %c0_0] : memref<8x50xf32, #tpu.memory_space<vmem>>, vector<8x50xf32>
    %1 = arith.truncf %0 : vector<8x50xf32> to vector<8x50xbf16>
    %c0_1 = arith.constant 0 : index
    %c0_2 = arith.constant 0 : index
    %2 = vector.load %arg3[%c0_1, %c0_2] : memref<32x50xf32, #tpu.memory_space<vmem>>, vector<32x50xf32>
    %3 = arith.truncf %2 : vector<32x50xf32> to vector<32x50xbf16>
    %cst = arith.constant dense<0.000000e+00> : vector<32x8xf32>
    %4 = tpu.matmul %3, %1, %cst {dimension_numbers = #tpu.dot_dimension_numbers<[1], [1], [0], [0], [0, 0, 1, 0], [], []>} : vector<32x50xbf16>, vector<8x50xbf16>, vector<32x8xf32> -> vector<32x8xf32>
    %c0_3 = arith.constant 0 : index
    %c0_4 = arith.constant 0 : index
    %5 = vector.load %arg4[%c0_3, %c0_4] : memref<32x1xf32, #tpu.memory_space<vmem>>, vector<32x1xf32>
    %6 = vector.broadcast %5 : vector<32x1xf32> to vector<32x8xf32>
    %7 = arith.addf %4, %6 : vector<32x8xf32>
    %cst_5 = arith.constant 0.000000e+00 : f32
    %8 = vector.broadcast %cst_5 : f32 to vector<32x8xf32>
    %9 = arith.maximumf %7, %8 : vector<32x8xf32>
    %c0_6 = arith.constant 0 : index
    %c0_7 = arith.constant 0 : index
    %10 = vector.load %arg5[%c0_6, %c0_7] : memref<16x32xf32, #tpu.memory_space<vmem>>, vector<16x32xf32>
    %11 = arith.truncf %10 : vector<16x32xf32> to vector<16x32xbf16>
    %12 = arith.truncf %9 : vector<32x8xf32> to vector<32x8xbf16>
    %cst_8 = arith.constant dense<0.000000e+00> : vector<16x8xf32>
    %13 = tpu.matmul %11, %12, %cst_8 {dimension_numbers = #tpu.dot_dimension_numbers<[1], [0], [0], [1], [0, 0, 1, 1], [], []>} : vector<16x32xbf16>, vector<32x8xbf16>, vector<16x8xf32> -> vector<16x8xf32>
    %c0_9 = arith.constant 0 : index
    %c0_10 = arith.constant 0 : index
    %14 = vector.load %arg6[%c0_9, %c0_10] : memref<16x1xf32, #tpu.memory_space<vmem>>, vector<16x1xf32>
    %15 = vector.broadcast %14 : vector<16x1xf32> to vector<16x8xf32>
    %16 = arith.addf %13, %15 : vector<16x8xf32>
    %c0_11 = arith.constant 0 : index
    %17 = memref.load %arg1[%c0_11] : memref<1xf32, #tpu.memory_space<smem>>
    %cst_12 = arith.constant 0.000000e+00 : f32
    %18 = vector.broadcast %cst_12 : f32 to vector<16x8xf32>
    %19 = arith.cmpf oge, %16, %18 : vector<16x8xf32>
    %20 = vector.broadcast %17 : f32 to vector<16x8xf32>
    %21 = arith.mulf %20, %16 : vector<16x8xf32>
    %22 = arith.select %19, %16, %21 : vector<16x8xi1>, vector<16x8xf32>
    %c0_13 = arith.constant 0 : index
    %c0_14 = arith.constant 0 : index
    %23 = vector.load %arg7[%c0_13, %c0_14] : memref<16x1xf32, #tpu.memory_space<vmem>>, vector<16x1xf32>
    %24 = vector.broadcast %23 : vector<16x1xf32> to vector<16x8xf32>
    %25 = arith.mulf %24, %22 : vector<16x8xf32>
    %cst_15 = arith.constant dense<0.000000e+00> : vector<8xf32>
    %26 = vector.multi_reduction <add>, %25, %cst_15 [0] : vector<16x8xf32> to vector<8xf32>
    %27 = vector.shape_cast %26 : vector<8xf32> to vector<1x8xf32>
    %c0_16 = arith.constant 0 : index
    %c0_17 = arith.constant 0 : index
    %28 = vector.load %arg8[%c0_16, %c0_17] : memref<1x1xf32, #tpu.memory_space<vmem>>, vector<1x1xf32>
    %29 = vector.broadcast %28 : vector<1x1xf32> to vector<1x8xf32>
    %30 = arith.addf %27, %29 : vector<1x8xf32>
    %31 = arith.negf %30 : vector<1x8xf32>
    %32 = math.exp %31 : vector<1x8xf32>
    %cst_18 = arith.constant 1.000000e+00 : f32
    %33 = vector.broadcast %cst_18 : f32 to vector<1x8xf32>
    %34 = arith.addf %33, %32 : vector<1x8xf32>
    %35 = arith.divf %33, %34 : vector<1x8xf32>
    %c0_19 = arith.constant 0 : index
    %c0_20 = arith.constant 0 : index
    %36 = vector.load %arg9[%c0_19, %c0_20] : memref<1x8xf32, #tpu.memory_space<vmem>>, vector<1x8xf32>
    tpu.vector_store %arg9[%c0_19, %c0_20], %35 {strides = array<i32>} : memref<1x8xf32, #tpu.memory_space<vmem>>, vector<1x8xf32>,
    return
  }
  func.func @transform_0(%arg0: i32) -> i32 {
    %c0_i32 = arith.constant 0 : i32
    %c0_i32_0 = arith.constant 0 : i32
    return %c0_i32 : i32
  }
  func.func @transform_1(%arg0: i32) -> (i32, i32) {
    %c0_i32 = arith.constant 0 : i32
    %c0_i32_0 = arith.constant 0 : i32
    return %arg0, %c0_i32 : i32, i32
  }
  func.func @transform_2(%arg0: i32) -> (i32, i32) {
    %c0_i32 = arith.constant 0 : i32
    %c0_i32_0 = arith.constant 0 : i32
    %c0_i32_1 = arith.constant 0 : i32
    return %c0_i32, %c0_i32_0 : i32, i32
  }
  func.func @transform_3(%arg0: i32) -> (i32, i32) {
    %c0_i32 = arith.constant 0 : i32
    %c0_i32_0 = arith.constant 0 : i32
    %c0_i32_1 = arith.constant 0 : i32
    return %c0_i32, %c0_i32_0 : i32, i32
  }
  func.func @transform_4(%arg0: i32) -> (i32, i32) {
    %c0_i32 = arith.constant 0 : i32
    %c0_i32_0 = arith.constant 0 : i32
    %c0_i32_1 = arith.constant 0 : i32
    return %c0_i32, %c0_i32_0 : i32, i32
  }
  func.func @transform_5(%arg0: i32) -> (i32, i32) {
    %c0_i32 = arith.constant 0 : i32
    %c0_i32_0 = arith.constant 0 : i32
    %c0_i32_1 = arith.constant 0 : i32
    return %c0_i32, %c0_i32_0 : i32, i32
  }
  func.func @transform_6(%arg0: i32) -> (i32, i32) {
    %c0_i32 = arith.constant 0 : i32
    %c0_i32_0 = arith.constant 0 : i32
    %c0_i32_1 = arith.constant 0 : i32
    return %c0_i32, %c0_i32_0 : i32, i32
  }
  func.func @transform_7(%arg0: i32) -> (i32, i32) {
    %c0_i32 = arith.constant 0 : i32
    %c0_i32_0 = arith.constant 0 : i32
    %c0_i32_1 = arith.constant 0 : i32
    return %c0_i32, %c0_i32_0 : i32, i32
  }
  func.func @transform_8(%arg0: i32) -> (i32, i32) {
    %c0_i32 = arith.constant 0 : i32
    %c0_i32_0 = arith.constant 0 : i32
    return %c0_i32, %arg0 : i32, i32
  }
}

</mosaic_0001>

<llo_original>
// kernel: tpu_custom_call.1
$region0: #{tpu_custom_call.1}
  #allocation0 [shape = 'u32[]', space=smem, size = 0x4, offset = 0x4, fixed_abs, tag = 'smem constant byte address 0x4 - core index']
  #allocation1 [shape = 'u32[144,128]{1,0:T(1,128)}', space=vmem, size = 0x12000, scoped, tag = 'internal scratch']
  #allocation2 [shape = 'f32[1]{0:T(128)S(6)}', space=smem, size = 0x200, scoped, tag = 'scoped memory for tpu_custom_call.1']
  #allocation3 [shape = 'f32[1,1]{1,0:T(1,128)S(1)}', space=vmem, size = 0x200, scoped, tag = 'scoped memory for tpu_custom_call.1']
  %s0 = inlined_call_operand.<no memory space> [shape: f32[1], index: 0, kind: input, shape index: {}]
  %s1 = inlined_call_operand.vmem [shape: f32[8,50], index: 1, kind: input, shape index: {}]
  %s2 = inlined_call_operand.vmem [shape: f32[32,50], index: 2, kind: input, shape index: {}]
  %s3 = inlined_call_operand.vmem [shape: f32[32,1], index: 3, kind: input, shape index: {}]
  %s4 = inlined_call_operand.vmem [shape: f32[16,32], index: 4, kind: input, shape index: {}]
  %s5 = inlined_call_operand.vmem [shape: f32[16,1], index: 5, kind: input, shape index: {}]
  %s6 = inlined_call_operand.vmem [shape: f32[16,1], index: 6, kind: input, shape index: {}]
  %s7 = inlined_call_operand.<no memory space> [shape: f32[1,1], index: 7, kind: input, shape index: {}]
  %s8 = inlined_call_operand.hbm [shape: f32[1,8], index: 8, kind: output, shape index: {}]
  %s9 = sld [smem:[#allocation0]]
  $region42: #{tpu_custom_call.1} parent=0
    _
  %s11 = ssub.s32 1, %s9
  %s12 = scalar_select 0, %s11, %s9
  %13 = sst [smem:[#allocation2]] %s0
  %v14 = vstv %s7
  %15 = vst [vmem:[#allocation3] sm:$0x1] %v14
  $region1: #{tpu_custom_call.1} parent=0
    #allocation4 [shape = 'u8[512]{0}', space=vmem, size = 0x400, scoped, tag = 'output window, operand 0, single buffered']
    #allocation5 [shape = 's32[1]{0}', space=sflag, size = 0x4, scoped, tag = 'scoped memory for tpu_custom_call.1']
    %16 = vsyncpa [#allocation5], 0
    // Predicated region
    $region2: #{tpu_custom_call.1} parent=1 // pred_check
      _
    $region3: #{tpu_custom_call.1} parent=1 // pred_check_branch
      %18 = sbr.rel (0) target = $region5
    $region4: #{tpu_custom_call.1} parent=1 // pred_region
      _
    $region5: #{tpu_custom_call.1} parent=1 // pred_fallthru
      _
    // Predicated region
    $region6: #{tpu_custom_call.1} parent=1 // pred_check
      _
    $region7: #{tpu_custom_call.1} parent=1 // pred_check_branch
      %20 = sbr.rel (0) target = $region9
    $region8: #{tpu_custom_call.1} parent=1 // pred_region
      _
    $region9: #{tpu_custom_call.1} parent=1 // pred_fallthru
      _
    // Predicated region
    $region10: #{tpu_custom_call.1} parent=1 // pred_check
      _
    $region11: #{tpu_custom_call.1} parent=1 // pred_check_branch
      %22 = sbr.rel (0) target = $region13
    $region12: #{tpu_custom_call.1} parent=1 // pred_region
      _
    $region13: #{tpu_custom_call.1} parent=1 // pred_fallthru
      _
    // Predicated region
    $region14: #{tpu_custom_call.1} parent=1 // pred_check
      _
    $region15: #{tpu_custom_call.1} parent=1 // pred_check_branch
      %24 = sbr.rel (0) target = $region17
    $region16: #{tpu_custom_call.1} parent=1 // pred_region
      _
    $region17: #{tpu_custom_call.1} parent=1 // pred_fallthru
      _
    // Predicated region
    $region18: #{tpu_custom_call.1} parent=1 // pred_check
      _
    $region19: #{tpu_custom_call.1} parent=1 // pred_check_branch
      %26 = sbr.rel (0) target = $region21
    $region20: #{tpu_custom_call.1} parent=1 // pred_region
      _
    $region21: #{tpu_custom_call.1} parent=1 // pred_fallthru
      _
    // Predicated region
    $region22: #{tpu_custom_call.1} parent=1 // pred_check
      _
    $region23: #{tpu_custom_call.1} parent=1 // pred_check_branch
      %28 = sbr.rel (0) target = $region25
    $region24: #{tpu_custom_call.1} parent=1 // pred_region
      _
    $region25: #{tpu_custom_call.1} parent=1 // pred_fallthru
      _
    // Predicated region
    $region26: #{tpu_custom_call.1} parent=1 // pred_check
      _
    $region27: #{tpu_custom_call.1} parent=1 // pred_check_branch
      %30 = sbr.rel (0) target = $region29
    $region28: #{tpu_custom_call.1} parent=1 // pred_region
      _
    $region29: #{tpu_custom_call.1} parent=1 // pred_fallthru
      _
    // Predicated region
    $region30: #{tpu_custom_call.1} parent=1 // pred_check
      _
    $region31: #{tpu_custom_call.1} parent=1 // pred_check_branch
      %32 = sbr.rel (0) target = $region33
    $region32: #{tpu_custom_call.1} parent=1 // pred_region
      _
    $region33: #{tpu_custom_call.1} parent=1 // pred_fallthru
      _
    %v34 = vld [vmem:[%s1] sm:$0xff]
    %v35 = vpack.c.bf16 %v34, %v34
    %v36 = vld [vmem:[%s2] sm:$0xff]
    %v37 = vld [vmem:[%s2 + $0x8] sm:$0xff]
    %v38 = vld [vmem:[%s2 + $0x10] sm:$0xff]
    %v39 = vld [vmem:[%s2 + $0x18] sm:$0xff]
    %v40 = vpack.c.bf16 %v37, %v36
    %v41 = vpack.c.bf16 %v39, %v38
    %v42 = vld [vmem:[%s3] sm:$0xff]
    %v43 = vld [vmem:[%s3 + $0x8] sm:$0xff]
    %v44 = vld [vmem:[%s3 + $0x10] sm:$0xff]
    %v45 = vld [vmem:[%s3 + $0x18] sm:$0xff]
    %47 = vset.pattern.permute.xlu0 0
    %48 = vperm.xlu0 %47, %v42
    %v49 = vpop.permute.xlu0 %48
    %52 = vset.pattern.permute.xlu0 0
    %53 = vperm.xlu0 %52, %v43
    %v54 = vpop.permute.xlu0 %53
    %57 = vset.pattern.permute.xlu0 0
    %58 = vperm.xlu0 %57, %v44
    %v59 = vpop.permute.xlu0 %58
    %62 = vset.pattern.permute.xlu0 0
    %63 = vperm.xlu0 %62, %v45
    %v64 = vpop.permute.xlu0 %63
    %vm66 = vcmask 408576
    %v68 = vsel %vm66, %v40, 0
    %v71 = vsel %vm66, %v41, 0
    %v74 = vsel %vm66, %v35, 0
    %76 = vmatprep.subr.bf16.mxu0 0
    %77 = vmatpush1.bf16.xpose.msra.mxu0 %v74
    %78 = vmatprep.subr.bf16.mxu0 0
    %79 = vmatpush1.bf16.xpose.msra.mxu0 0
    %80 = vmatprep.subr.bf16.mxu0 0
    %81 = vmatpush1.bf16.xpose.msra.mxu0 0
    %82 = vmatprep.subr.bf16.mxu0 0
    %83 = vmatpush1.bf16.xpose.msra.mxu0 0
    %84 = vmatprep.subr.bf16.mxu0 0
    %85 = vmatpush1.bf16.xpose.msra.mxu0 0
    %86 = vmatprep.subr.bf16.mxu0 0
    %87 = vmatpush1.bf16.xpose.msra.mxu0 0
    %88 = vmatprep.subr.bf16.mxu0 0
    %89 = vmatpush1.bf16.xpose.msra.mxu0 0
    %90 = vmatprep.subr.bf16.mxu0 0
    %91 = vmatpush1.bf16.xpose.msra.mxu0 0
    %92 = vmatprep.subr.bf16.mxu0 0
    %93 = vmatpush1.bf16.xpose.msra.mxu0 0
    %94 = vmatprep.subr.bf16.mxu0 0
    %95 = vmatpush1.bf16.xpose.msra.mxu0 0
    %96 = vmatprep.subr.bf16.mxu0 0
    %97 = vmatpush1.bf16.xpose.msra.mxu0 0
    %98 = vmatprep.subr.bf16.mxu0 0
    %99 = vmatpush1.bf16.xpose.msra.mxu0 0
    %100 = vmatprep.subr.bf16.mxu0 0
    %101 = vmatpush1.bf16.xpose.msra.mxu0 0
    %102 = vmatprep.subr.bf16.mxu0 0
    %103 = vmatpush1.bf16.xpose.msra.mxu0 0
    %104 = vmatprep.subr.bf16.mxu0 0
    %105 = vmatpush1.bf16.xpose.msra.mxu0 0
    %106 = vmatprep.subr.bf16.mxu0 0
    %107 = vmatpush1.bf16.xpose.msra.mxu0 0
    %108 = vmatprep.mubr.bf16.mxu0 0
    %109 = vmatmul.mubr.bf16.gmra.mrb[0].mxu0 %v68
    %v110 = vpop.f32.mrb[0].mxu0
    %v111 = vadd.f32 %v49, %v110
    %v112 = vpop.f32.mrb[0].mxu0
    %v113 = vpop.f32.mrb[0].mxu0
    %v114 = vadd.f32 %v54, %v113
    %v115 = vpop.f32.mrb[0].mxu0
    %116 = vmatprep.mubr.bf16.mxu0 0
    %117 = vmatmul.mubr.bf16.gmra.mrb[0].mxu0 %v71
    %v118 = vpop.f32.mrb[0].mxu0
    %v119 = vadd.f32 %v59, %v118
    %v120 = vpop.f32.mrb[0].mxu0
    %v121 = vpop.f32.mrb[0].mxu0
    %v122 = vadd.f32 %v64, %v121
    %v123 = vpop.f32.mrb[0].mxu0
    %124 = vdwg.mxu0
    %v125 = vmax.f32 %v111, 0.0
    %v126 = vmax.f32 %v114, 0.0
    %v127 = vmax.f32 %v119, 0.0
    %v128 = vmax.f32 %v122, 0.0
    %v129 = vld [vmem:[%s4] sm:$0xff]
    %v130 = vld [vmem:[%s4 + $0x8] sm:$0xff]
    %v131 = vpack.c.bf16 %v130, %v129
    %v132 = vpack.c.bf16 %v126, %v125
    %v133 = vpack.c.bf16 %v128, %v127
    %v134 = vld [vmem:[%s5] sm:$0xff]
    %v135 = vld [vmem:[%s5 + $0x8] sm:$0xff]
    %137 = vset.pattern.permute.xlu0 0
    %138 = vperm.xlu0 %137, %v134
    %v139 = vpop.permute.xlu0 %138
    %142 = vset.pattern.permute.xlu0 0
    %143 = vperm.xlu0 %142, %v135
    %v144 = vpop.permute.xlu0 %143
    %vm146 = vcmask 261120
    %v148 = vsel %vm146, %v131, 0
    %150 = vmatprep.subr.bf16.mxu0 0
    %151 = vmatpush1.bf16.msra.mxu0 %v132
    %152 = vmatprep.subr.bf16.mxu0 0
    %153 = vmatpush1.bf16.msra.mxu0 %v133
    %154 = vmatprep.subr.bf16.mxu0 0
    %155 = vmatpush1.bf16.msra.mxu0 0
    %156 = vmatprep.subr.bf16.mxu0 0
    %157 = vmatpush1.bf16.msra.mxu0 0
    %158 = vmatprep.subr.bf16.mxu0 0
    %159 = vmatpush1.bf16.msra.mxu0 0
    %160 = vmatprep.subr.bf16.mxu0 0
    %161 = vmatpush1.bf16.msra.mxu0 0
    %162 = vmatprep.subr.bf16.mxu0 0
    %163 = vmatpush1.bf16.msra.mxu0 0
    %164 = vmatprep.subr.bf16.mxu0 0
    %165 = vmatpush1.bf16.msra.mxu0 0
    %166 = vmatprep.subr.bf16.mxu0 0
    %167 = vmatpush1.bf16.msra.mxu0 0
    %168 = vmatprep.subr.bf16.mxu0 0
    %169 = vmatpush1.bf16.msra.mxu0 0
    %170 = vmatprep.subr.bf16.mxu0 0
    %171 = vmatpush1.bf16.msra.mxu0 0
    %172 = vmatprep.subr.bf16.mxu0 0
    %173 = vmatpush1.bf16.msra.mxu0 0
    %174 = vmatprep.subr.bf16.mxu0 0
    %175 = vmatpush1.bf16.msra.mxu0 0
    %176 = vmatprep.subr.bf16.mxu0 0
    %177 = vmatpush1.bf16.msra.mxu0 0
    %178 = vmatprep.subr.bf16.mxu0 0
    %179 = vmatpush1.bf16.msra.mxu0 0
    %180 = vmatprep.subr.bf16.mxu0 0
    %181 = vmatpush1.bf16.msra.mxu0 0
    %182 = vmatprep.mubr.bf16.mxu0 0
    %183 = vmatmul.mubr.bf16.gmra.mrb[0].mxu0 %v148
    %v184 = vpop.f32.mrb[0].mxu0
    %v185 = vadd.f32 %v139, %v184
    %v186 = vpop.f32.mrb[0].mxu0
    %v187 = vpop.f32.mrb[0].mxu0
    %v188 = vadd.f32 %v144, %v187
    %v189 = vpop.f32.mrb[0].mxu0
    %190 = vdwg.mxu0
    %s191 = sld [smem:[#allocation2]]
    %vm192 = vcmp.ge.f32.partialorder %v185, 0.0
    %vm193 = vcmp.ge.f32.partialorder %v188, 0.0
    %v194 = vstv %s191
    %v195 = vmul.f32 %v194, %v185
    %v196 = vmul.f32 %v194, %v188
    %v197 = vsel %vm192, %v185, %v195
    %v198 = vsel %vm193, %v188, %v196
    %v199 = vld [vmem:[%s6] sm:$0xff]
    %v200 = vld [vmem:[%s6 + $0x8] sm:$0xff]
    %202 = vset.pattern.permute.xlu0 0
    %203 = vperm.xlu0 %202, %v199
    %v204 = vpop.permute.xlu0 %203
    %207 = vset.pattern.permute.xlu0 0
    %208 = vperm.xlu0 %207, %v200
    %v209 = vpop.permute.xlu0 %208
    %v211 = vmul.f32 %v204, %v197
    %v212 = vmul.f32 %v209, %v198
    %vm213 = vcmask 64512
    %v214 = vsel %vm213, %v211, 0.0
    %v215 = vsel %vm213, %v212, 0.0
    %v216 = vadd.f32 %v214, %v215
    %v217 = vrot.slane %v216, 4
    %v218 = vadd.f32 %v216, %v217
    %v219 = vrot.slane %v218, 2
    %v220 = vadd.f32 %v218, %v219
    %v221 = vrot.slane %v220, 1
    %v222 = vadd.f32 %v220, %v221
    %v223 = vld [vmem:[#allocation3] sm:$0x1]
    %225 = vset.pattern.permute.xlu0 0
    %226 = vperm.xlu0 %225, %v223
    %v227 = vpop.permute.xlu0 %226
    %v229 = vlaneseq
    %v230 = vshrl.u32 %v229, 7
    %v231 = vsub.s32 0, %v230
    %v232 = vrot.slane %v227, %v231
    %v233 = vadd.f32 %v222, %v232
    %v234 = vxor.u32 %v233, 2147483648
    %v235 = vmul.f32 %v234, 1.442695
    %v236 = vpow.pop %v235
    %v237 = vadd.f32 %v236, 1.0
    %v238 = vrcp.pop %v237
    %v239 = vmul.f32 1.0, %v238
    %vm240 = vcmask 57344
    %241 = vst.msk [vmem:[#allocation4] sm:$0x1] %vm240, %v239
    // Predicated region
    $region34: #{tpu_custom_call.1} parent=1 // pred_check
      _
    $region35: #{tpu_custom_call.1} parent=1 // pred_check_branch
      %243 = sbr.rel (0) target = $region37
    $region36: #{tpu_custom_call.1} parent=1 // pred_region
      %s245 = ssub.s32 16, 16
      %246 = vsyncadd [#allocation5], %s245
      %s248 = sshll.u32 [#allocation4], 4
      %s249 = int_to_ptr.vmem [resolvable:$true] %s248
      %251 = dma.vmem_to_hbm [thread:$0]  %s249, 16, %s8, [#allocation5]
    $region37: #{tpu_custom_call.1} parent=1 // pred_fallthru
      _
    // Predicated region
    $region38: #{tpu_custom_call.1} parent=1 // pred_check
      _
    $region39: #{tpu_custom_call.1} parent=1 // pred_check_branch
      %253 = sbr.rel (0) target = $region41
    $region40: #{tpu_custom_call.1} parent=1 // pred_region
      %254 = dma.done [#allocation5], 16
    $region41: #{tpu_custom_call.1} parent=1 // pred_fallthru
      _
    %255 = vsyncpa [#allocation5], 1

</llo_original>
